<compile_context>
chip_gen: v5e
topology: v5e:2x2
jax: 0.10.0
libtpu: 0.0.40
codegen_flags: <defaults>
</compile_context>

<pallas_src>
import jax
import jax.numpy as jnp
from jax import lax
from jax.experimental import pallas as pl
from jax.experimental.pallas import tpu as pltpu

KH = KW = 3
PAD = 1
BN_EPS = 1e-5


# ----------------------------------------------------------------------------
# parameter folding / layout helpers (wrapper side, all cheap)
# ----------------------------------------------------------------------------
def fold_bn_into_conv(p):
    """Fold eval-mode BN scale/shift + conv bias into conv weights (f32)."""
    w1f = p["s1"][:, None, None, None] * p["w1"]
    b1f = p["s1"] * p["b1"] + p["sh1"]
    w2f = p["s2"][:, None, None, None] * p["w2"]
    b2f = p["s2"] * p["b2"] + p["sh2"]
    return w1f, b1f, w2f, b2f


def _im2col_weights(wf, C, Cp, dtype):
    """[Co, Ci, KH, KW] -> [Cp, 9*Cp] with element [co, t*Cp+ci] = wf[co,ci,kh,kw]."""
    w = jnp.transpose(wf, (0, 2, 3, 1))                       # [Co, KH, KW, Ci]
    w = jnp.pad(w, ((0, Cp - C), (0, 0), (0, 0), (0, Cp - C)))
    return w.reshape(Cp, KH * KW * Cp).astype(dtype)


def _default_images_per_step(N):
    # Keep >= 2 grid steps (two v7x TensorCores) while batching images.
    nb = 1
    while N % (2 * nb) == 0 and N // (2 * nb) >= 2:
        nb *= 2
    return nb


# ----------------------------------------------------------------------------
# kernel
# ----------------------------------------------------------------------------
def _build_kernel(Nb, C, Cp, H, W):
    HW = H * W
    P0 = 128                      # payload lane offset (aligned to lane tiles)
    XLEN = P0 + HW + W + 1        # [unused|top-row halo | payload | bottom-row halo]

    def kernel(x_ref, w1_ref, b1_ref, w2_ref, b2_ref, o_ref,
               xpad_ref, mid_ref, col_ref):
        # Column-wrap masks for the flattened row-major layout (in-kernel iota
        # instead of a DMA'd mask input).
        col = lax.broadcasted_iota(jnp.int32, (1, HW), 1) % W
        not_left = col != 0               # tap dw = -1 wraps to previous row
        not_right = col != (W - 1)        # tap dw = +1 wraps to next row

        # Re-zero the haloed scratches every step (cheap; cannot be gated on
        # program_id==0 because scratch is per-core under "parallel").
        xpad_ref[...] = jnp.zeros(xpad_ref.shape, xpad_ref.dtype)
        mid_ref[...] = jnp.zeros(mid_ref.shape, mid_ref.dtype)

        def conv3x3(src_ref, w_ref):
            # im2col: stack the 9 shifted/masked slabs along K, one MXU matmul.
            for t in range(KH * KW):
                dh, dw = t // KW - 1, t % KW - 1
                slab = src_ref[:, pl.ds(P0 + dh * W + dw, HW)]
                if dw == -1:
                    slab = jnp.where(not_left, slab, 0)
                elif dw == 1:
                    slab = jnp.where(not_right, slab, 0)
                col_ref[pl.ds(t * Cp, Cp), :] = slab
            return jnp.dot(w_ref[...], col_ref[...],
                           preferred_element_type=jnp.float32)

        for n in range(Nb):                                   # static inner loop
            # Image -> row-haloed scratch (payload store is lane-aligned).
            xpad_ref[pl.ds(0, C), pl.ds(P0, HW)] = x_ref[n]

            # conv1 (+ folded BN1) + ReLU -> intermediate scratch
            h1 = jnp.maximum(conv3x3(xpad_ref, w1_ref) + b1_ref[...], 0.0)
            mid_ref[:, pl.ds(P0, HW)] = h1.astype(mid_ref.dtype)

            # conv2 (+ folded BN2) + residual + ReLU -> compact output
            res = xpad_ref[:, pl.ds(P0, HW)].astype(jnp.float32)
            out = jnp.maximum(conv3x3(mid_ref, w2_ref) + b2_ref[...] + res, 0.0)
            o_ref[n] = out[0:C, :].astype(o_ref.dtype)

    return kernel, XLEN


# ----------------------------------------------------------------------------
# wrapper
# ----------------------------------------------------------------------------
def residual_block(x, params, *, compute_dtype=jnp.float32, images_per_step=None):
    N, C, H, W = x.shape
    HW = H * W
    Cp = max(8, ((C + 7) // 8) * 8)
    Nb = images_per_step if images_per_step is not None else _default_images_per_step(N)
    assert N % Nb == 0

    # Fold BN in f32, cast last (per perf review).
    w1f, b1f, w2f, b2f = fold_bn_into_conv(params)
    w1_t = _im2col_weights(w1f, C, Cp, compute_dtype)
    w2_t = _im2col_weights(w2f, C, Cp, compute_dtype)
    b1_p = jnp.pad(b1f, (0, Cp - C)).reshape(Cp, 1).astype(jnp.float32)
    b2_p = jnp.pad(b2f, (0, Cp - C)).reshape(Cp, 1).astype(jnp.float32)

    x_flat = x.reshape(N, C, HW).astype(compute_dtype)        # compact, lane-dense

    kernel, XLEN = _build_kernel(Nb, C, Cp, H, W)

    # VMEM budget from actual buffer sums, clamped so it is valid on v7x (64 MiB).
    it = jnp.dtype(compute_dtype).itemsize
    est = (2 * Nb * C * HW * (it + 4)                          # x / out streams (dbl-buffered)
           + 2 * (2 * Cp * KH * KW * Cp * it + 2 * Cp * 4)     # weights + biases
           + (2 * XLEN + KH * KW * HW) * Cp * it)              # xpad + mid + im2col scratch
    vmem_limit = int(min(64 * 1024 * 1024, max(4 * 1024 * 1024, 2 * est)))

    out = pl.pallas_call(
        kernel,
        out_shape=jax.ShapeDtypeStruct((N, C, HW), jnp.float32),
        grid=(N // Nb,),
        in_specs=[
            pl.BlockSpec((Nb, C, HW), lambda i: (i, 0, 0)),
            pl.BlockSpec((Cp, KH * KW * Cp), lambda i: (0, 0)),
            pl.BlockSpec((Cp, 1), lambda i: (0, 0)),
            pl.BlockSpec((Cp, KH * KW * Cp), lambda i: (0, 0)),
            pl.BlockSpec((Cp, 1), lambda i: (0, 0)),
        ],
        out_specs=pl.BlockSpec((Nb, C, HW), lambda i: (i, 0, 0)),
        scratch_shapes=[
            pltpu.VMEM((Cp, XLEN), compute_dtype),             # row-haloed input
            pltpu.VMEM((Cp, XLEN), compute_dtype),             # row-haloed conv1 output
            pltpu.VMEM((KH * KW * Cp, HW), compute_dtype),     # im2col scratch
        ],
        compiler_params=pltpu.CompilerParams(
            dimension_semantics=("parallel",),
            vmem_limit_bytes=vmem_limit,
        ),
    )(x_flat, w1_t, b1_p, w2_t, b2_p)

    return out.reshape(N, C, H, W)


# ----------------------------------------------------------------------------
# test harness
# ----------------------------------------------------------------------------
def make_params(key, channels):
    ks = jax.random.split(key, 12)
    C = channels

    def bn_fold(kg, kb, km, kv):
        gamma = jax.random.normal(kg, (C,), jnp.float32) * 0.1 + 1.0
        beta = jax.random.normal(kb, (C,), jnp.float32) * 0.1
        mean = jax.random.normal(km, (C,), jnp.float32) * 0.1
        var = jax.random.uniform(kv, (C,), jnp.float32, 0.5, 1.5)
        scale = gamma / jnp.sqrt(var + BN_EPS)
        shift = beta - mean * scale
        return scale, shift

    w1 = jax.random.normal(ks[0], (C, C, KH, KW), jnp.float32) * 0.2
    b1 = jax.random.normal(ks[1], (C,), jnp.float32) * 0.1
    s1, sh1 = bn_fold(ks[2], ks[3], ks[4], ks[5])
    w2 = jax.random.normal(ks[6], (C, C, KH, KW), jnp.float32) * 0.2
    b2 = jax.random.normal(ks[7], (C,), jnp.float32) * 0.1
    s2, sh2 = bn_fold(ks[8], ks[9], ks[10], ks[11])
    return dict(w1=w1, b1=b1, s1=s1, sh1=sh1, w2=w2, b2=b2, s2=s2, sh2=sh2)


def reference(x, params, compute_dtype=jnp.float32):
    """Pure-JAX reference of the same forward pass at matched precision."""
    w1f, b1f, w2f, b2f = fold_bn_into_conv(params)
    cd = compute_dtype
    prec = (lax.Precision.HIGHEST if jnp.dtype(cd) == jnp.dtype(jnp.float32)
            else lax.Precision.DEFAULT)

    def conv(h, w):
        return lax.conv_general_dilated(
            h.astype(cd), w.astype(cd), window_strides=(1, 1),
            padding=((PAD, PAD), (PAD, PAD)),
            dimension_numbers=("NCHW", "OIHW", "NCHW"),
            preferred_element_type=jnp.float32, precision=prec)

    h = jnp.maximum(conv(x, w1f) + b1f[None, :, None, None], 0.0)
    res = x.astype(cd).astype(jnp.float32)    # kernel keeps residual in compute dtype
    out = conv(h, w2f) + b2f[None, :, None, None] + res
    return jnp.maximum(out, 0.0)


if __name__ == "__main__":
    key = jax.random.PRNGKey(0)
    kx, kp = jax.random.split(key)
    N, C, H, W = 2, 4, 16, 16            # in_channels == out_channels == 4
    x = jax.random.normal(kx, (N, C, H, W), jnp.float32)
    params = make_params(kp, C)

    # f32 path: exact module semantics, tight tolerance.
    out_f32 = jax.block_until_ready(residual_block(x, params, compute_dtype=jnp.float32))
    assert out_f32.shape == (N, C, H, W)
    ref_f32 = reference(x, params, compute_dtype=jnp.float32)
    err_f32 = float(jnp.max(jnp.abs(out_f32 - ref_f32)))
    assert jnp.allclose(out_f32, ref_f32, atol=1e-3, rtol=1e-3), err_f32

    # bf16 path (production setting per perf review): compare against a
    # matched-precision bf16 reference with a loosened tolerance.
    out_bf = jax.block_until_ready(residual_block(x, params, compute_dtype=jnp.bfloat16))
    ref_bf = reference(x, params, compute_dtype=jnp.bfloat16)
    err_bf = float(jnp.max(jnp.abs(out_bf - ref_bf)))
    assert jnp.allclose(out_bf, ref_bf, atol=5e-2, rtol=5e-2), err_bf

    print("KERNEL_OK")
</pallas_src>

<mosaic_0001>
module attributes {stable_mosaic.version = 11 : i64} {
  func.func @kernel(%arg0: i32, %arg1: memref<1x4x256xf32, #tpu.memory_space<vmem>>, %arg2: memref<8x72xf32, #tpu.memory_space<vmem>>, %arg3: memref<8x1xf32, #tpu.memory_space<vmem>>, %arg4: memref<8x72xf32, #tpu.memory_space<vmem>>, %arg5: memref<8x1xf32, #tpu.memory_space<vmem>>, %arg6: memref<1x4x256xf32, #tpu.memory_space<vmem>>, %arg7: memref<8x401xf32, #tpu.memory_space<vmem>>, %arg8: memref<8x401xf32, #tpu.memory_space<vmem>>, %arg9: memref<72x256xf32, #tpu.memory_space<vmem>>) attributes {dimension_semantics = [#tpu.dimension_semantics<parallel>], iteration_bounds = array<i64: 2>, scalar_prefetch = 0 : i64, scratch_operands = 3 : i64, tpu.core_type = #tpu.core_type<tc>, window_params = [{transform_indices = @transform_0, window_bounds = array<i64: 1, 4, 256>}, {pipeline_mode = #tpu.pipeline_mode<synchronous>, transform_indices = @transform_1, window_bounds = array<i64: 8, 72>}, {pipeline_mode = #tpu.pipeline_mode<synchronous>, transform_indices = @transform_2, window_bounds = array<i64: 8, 1>}, {pipeline_mode = #tpu.pipeline_mode<synchronous>, transform_indices = @transform_3, window_bounds = array<i64: 8, 72>}, {pipeline_mode = #tpu.pipeline_mode<synchronous>, transform_indices = @transform_4, window_bounds = array<i64: 8, 1>}, {transform_indices = @transform_5, window_bounds = array<i64: 1, 4, 256>}]} {
    %0 = tpu.iota {dimensions = array<i32: 1>} : vector<1x256xi32>
    %c16_i32 = arith.constant 16 : i32
    %c0_i32 = arith.constant 0 : i32
    %1 = arith.cmpi eq, %c16_i32, %c0_i32 : i32
    %c1_i32 = arith.constant 1 : i32
    %2 = arith.select %1, %c1_i32, %c16_i32 : i32
    %3 = vector.broadcast %2 : i32 to vector<1x256xi32>
    %4 = arith.remsi %0, %3 : vector<1x256xi32>
    %c0_i32_0 = arith.constant 0 : i32
    %5 = vector.broadcast %c0_i32_0 : i32 to vector<1x256xi32>
    %6 = arith.cmpi ne, %4, %5 : vector<1x256xi32>
    %c0_i32_1 = arith.constant 0 : i32
    %7 = vector.broadcast %c0_i32_1 : i32 to vector<1x256xi32>
    %8 = arith.cmpi slt, %4, %7 : vector<1x256xi32>
    %c0_i32_2 = arith.constant 0 : i32
    %9 = arith.cmpi slt, %2, %c0_i32_2 : i32
    %10 = vector.broadcast %9 : i1 to vector<1x256xi1>
    %11 = vector.broadcast %10 : vector<1x256xi1> to vector<1x256xi1>
    %12 = arith.xori %8, %11 : vector<1x256xi1>
    %13 = arith.andi %12, %6 : vector<1x256xi1>
    %14 = vector.broadcast %2 : i32 to vector<1x256xi32>
    %15 = arith.addi %4, %14 : vector<1x256xi32>
    %16 = arith.select %13, %15, %4 : vector<1x256xi1>, vector<1x256xi32>
    %c0_i32_3 = arith.constant 0 : i32
    %17 = vector.broadcast %c0_i32_3 : i32 to vector<1x256xi32>
    %18 = arith.cmpi ne, %16, %17 : vector<1x256xi32>
    %c15_i32 = arith.constant 15 : i32
    %19 = vector.broadcast %c15_i32 : i32 to vector<1x256xi32>
    %20 = arith.cmpi ne, %16, %19 : vector<1x256xi32>
    %cst = arith.constant 0.000000e+00 : f32
    %21 = vector.broadcast %cst : f32 to vector<8x401xf32>
    %c0 = arith.constant 0 : index
    %c0_4 = arith.constant 0 : index
    %22 = vector.load %arg7[%c0, %c0_4] : memref<8x401xf32, #tpu.memory_space<vmem>>, vector<8x401xf32>
    tpu.vector_store %arg7[%c0, %c0_4], %21 {strides = array<i32>} : memref<8x401xf32, #tpu.memory_space<vmem>>, vector<8x401xf32>,
    %cst_5 = arith.constant 0.000000e+00 : f32
    %23 = vector.broadcast %cst_5 : f32 to vector<8x401xf32>
    %c0_6 = arith.constant 0 : index
    %c0_7 = arith.constant 0 : index
    %24 = vector.load %arg8[%c0_6, %c0_7] : memref<8x401xf32, #tpu.memory_space<vmem>>, vector<8x401xf32>
    tpu.vector_store %arg8[%c0_6, %c0_7], %23 {strides = array<i32>} : memref<8x401xf32, #tpu.memory_space<vmem>>, vector<8x401xf32>,
    %c0_8 = arith.constant 0 : index
    %c0_9 = arith.constant 0 : index
    %c0_10 = arith.constant 0 : index
    %25 = vector.load %arg1[%c0_8, %c0_9, %c0_10] : memref<1x4x256xf32, #tpu.memory_space<vmem>>, vector<1x4x256xf32>
    %26 = vector.shape_cast %25 : vector<1x4x256xf32> to vector<4x256xf32>
    %c0_11 = arith.constant 0 : index
    %c128 = arith.constant 128 : index
    %27 = vector.load %arg7[%c0_11, %c128] : memref<8x401xf32, #tpu.memory_space<vmem>>, vector<4x256xf32>
    tpu.vector_store %arg7[%c0_11, %c128], %26 {strides = array<i32>} : memref<8x401xf32, #tpu.memory_space<vmem>>, vector<4x256xf32>,
    %c0_12 = arith.constant 0 : index
    %c111 = arith.constant 111 : index
    %28 = vector.load %arg7[%c0_12, %c111] : memref<8x401xf32, #tpu.memory_space<vmem>>, vector<8x256xf32>
    %c0_i32_13 = arith.constant 0 : i32
    %29 = arith.sitofp %c0_i32_13 : i32 to f32
    %30 = vector.shape_cast %18 : vector<1x256xi1> to vector<1x256xi1>
    %31 = vector.broadcast %30 : vector<1x256xi1> to vector<8x256xi1>
    %32 = vector.broadcast %29 : f32 to vector<8x256xf32>
    %33 = arith.select %31, %28, %32 : vector<8x256xi1>, vector<8x256xf32>
    %c0_14 = arith.constant 0 : index
    %c0_15 = arith.constant 0 : index
    %34 = vector.load %arg9[%c0_14, %c0_15] : memref<72x256xf32, #tpu.memory_space<vmem>>, vector<8x256xf32>
    tpu.vector_store %arg9[%c0_14, %c0_15], %33 {strides = array<i32>} : memref<72x256xf32, #tpu.memory_space<vmem>>, vector<8x256xf32>,
    %c0_16 = arith.constant 0 : index
    %c112 = arith.constant 112 : index
    %35 = vector.load %arg7[%c0_16, %c112] : memref<8x401xf32, #tpu.memory_space<vmem>>, vector<8x256xf32>
    %c8 = arith.constant 8 : index
    %c0_17 = arith.constant 0 : index
    %36 = vector.load %arg9[%c8, %c0_17] : memref<72x256xf32, #tpu.memory_space<vmem>>, vector<8x256xf32>
    tpu.vector_store %arg9[%c8, %c0_17], %35 {strides = array<i32>} : memref<72x256xf32, #tpu.memory_space<vmem>>, vector<8x256xf32>,
    %c0_18 = arith.constant 0 : index
    %c113 = arith.constant 113 : index
    %37 = vector.load %arg7[%c0_18, %c113] : memref<8x401xf32, #tpu.memory_space<vmem>>, vector<8x256xf32>
    %c0_i32_19 = arith.constant 0 : i32
    %38 = arith.sitofp %c0_i32_19 : i32 to f32
    %39 = vector.shape_cast %20 : vector<1x256xi1> to vector<1x256xi1>
    %40 = vector.broadcast %39 : vector<1x256xi1> to vector<8x256xi1>
    %41 = vector.broadcast %38 : f32 to vector<8x256xf32>
    %42 = arith.select %40, %37, %41 : vector<8x256xi1>, vector<8x256xf32>
    %c16 = arith.constant 16 : index
    %c0_20 = arith.constant 0 : index
    %43 = vector.load %arg9[%c16, %c0_20] : memref<72x256xf32, #tpu.memory_space<vmem>>, vector<8x256xf32>
    tpu.vector_store %arg9[%c16, %c0_20], %42 {strides = array<i32>} : memref<72x256xf32, #tpu.memory_space<vmem>>, vector<8x256xf32>,
    %c0_21 = arith.constant 0 : index
    %c127 = arith.constant 127 : index
    %44 = vector.load %arg7[%c0_21, %c127] : memref<8x401xf32, #tpu.memory_space<vmem>>, vector<8x256xf32>
    %c0_i32_22 = arith.constant 0 : i32
    %45 = arith.sitofp %c0_i32_22 : i32 to f32
    %46 = vector.shape_cast %18 : vector<1x256xi1> to vector<1x256xi1>
    %47 = vector.broadcast %46 : vector<1x256xi1> to vector<8x256xi1>
    %48 = vector.broadcast %45 : f32 to vector<8x256xf32>
    %49 = arith.select %47, %44, %48 : vector<8x256xi1>, vector<8x256xf32>
    %c24 = arith.constant 24 : index
    %c0_23 = arith.constant 0 : index
    %50 = vector.load %arg9[%c24, %c0_23] : memref<72x256xf32, #tpu.memory_space<vmem>>, vector<8x256xf32>
    tpu.vector_store %arg9[%c24, %c0_23], %49 {strides = array<i32>} : memref<72x256xf32, #tpu.memory_space<vmem>>, vector<8x256xf32>,
    %c0_24 = arith.constant 0 : index
    %c128_25 = arith.constant 128 : index
    %51 = vector.load %arg7[%c0_24, %c128_25] : memref<8x401xf32, #tpu.memory_space<vmem>>, vector<8x256xf32>
    %c32 = arith.constant 32 : index
    %c0_26 = arith.constant 0 : index
    %52 = vector.load %arg9[%c32, %c0_26] : memref<72x256xf32, #tpu.memory_space<vmem>>, vector<8x256xf32>
    tpu.vector_store %arg9[%c32, %c0_26], %51 {strides = array<i32>} : memref<72x256xf32, #tpu.memory_space<vmem>>, vector<8x256xf32>,
    %c0_27 = arith.constant 0 : index
    %c129 = arith.constant 129 : index
    %53 = vector.load %arg7[%c0_27, %c129] : memref<8x401xf32, #tpu.memory_space<vmem>>, vector<8x256xf32>
    %c0_i32_28 = arith.constant 0 : i32
    %54 = arith.sitofp %c0_i32_28 : i32 to f32
    %55 = vector.shape_cast %20 : vector<1x256xi1> to vector<1x256xi1>
    %56 = vector.broadcast %55 : vector<1x256xi1> to vector<8x256xi1>
    %57 = vector.broadcast %54 : f32 to vector<8x256xf32>
    %58 = arith.select %56, %53, %57 : vector<8x256xi1>, vector<8x256xf32>
    %c40 = arith.constant 40 : index
    %c0_29 = arith.constant 0 : index
    %59 = vector.load %arg9[%c40, %c0_29] : memref<72x256xf32, #tpu.memory_space<vmem>>, vector<8x256xf32>
    tpu.vector_store %arg9[%c40, %c0_29], %58 {strides = array<i32>} : memref<72x256xf32, #tpu.memory_space<vmem>>, vector<8x256xf32>,
    %c0_30 = arith.constant 0 : index
    %c143 = arith.constant 143 : index
    %60 = vector.load %arg7[%c0_30, %c143] : memref<8x401xf32, #tpu.memory_space<vmem>>, vector<8x256xf32>
    %c0_i32_31 = arith.constant 0 : i32
    %61 = arith.sitofp %c0_i32_31 : i32 to f32
    %62 = vector.shape_cast %18 : vector<1x256xi1> to vector<1x256xi1>
    %63 = vector.broadcast %62 : vector<1x256xi1> to vector<8x256xi1>
    %64 = vector.broadcast %61 : f32 to vector<8x256xf32>
    %65 = arith.select %63, %60, %64 : vector<8x256xi1>, vector<8x256xf32>
    %c48 = arith.constant 48 : index
    %c0_32 = arith.constant 0 : index
    %66 = vector.load %arg9[%c48, %c0_32] : memref<72x256xf32, #tpu.memory_space<vmem>>, vector<8x256xf32>
    tpu.vector_store %arg9[%c48, %c0_32], %65 {strides = array<i32>} : memref<72x256xf32, #tpu.memory_space<vmem>>, vector<8x256xf32>,
    %c0_33 = arith.constant 0 : index
    %c144 = arith.constant 144 : index
    %67 = vector.load %arg7[%c0_33, %c144] : memref<8x401xf32, #tpu.memory_space<vmem>>, vector<8x256xf32>
    %c56 = arith.constant 56 : index
    %c0_34 = arith.constant 0 : index
    %68 = vector.load %arg9[%c56, %c0_34] : memref<72x256xf32, #tpu.memory_space<vmem>>, vector<8x256xf32>
    tpu.vector_store %arg9[%c56, %c0_34], %67 {strides = array<i32>} : memref<72x256xf32, #tpu.memory_space<vmem>>, vector<8x256xf32>,
    %c0_35 = arith.constant 0 : index
    %c145 = arith.constant 145 : index
    %69 = vector.load %arg7[%c0_35, %c145] : memref<8x401xf32, #tpu.memory_space<vmem>>, vector<8x256xf32>
    %c0_i32_36 = arith.constant 0 : i32
    %70 = arith.sitofp %c0_i32_36 : i32 to f32
    %71 = vector.shape_cast %20 : vector<1x256xi1> to vector<1x256xi1>
    %72 = vector.broadcast %71 : vector<1x256xi1> to vector<8x256xi1>
    %73 = vector.broadcast %70 : f32 to vector<8x256xf32>
    %74 = arith.select %72, %69, %73 : vector<8x256xi1>, vector<8x256xf32>
    %c64 = arith.constant 64 : index
    %c0_37 = arith.constant 0 : index
    %75 = vector.load %arg9[%c64, %c0_37] : memref<72x256xf32, #tpu.memory_space<vmem>>, vector<8x256xf32>
    tpu.vector_store %arg9[%c64, %c0_37], %74 {strides = array<i32>} : memref<72x256xf32, #tpu.memory_space<vmem>>, vector<8x256xf32>,
    %c0_38 = arith.constant 0 : index
    %c0_39 = arith.constant 0 : index
    %76 = vector.load %arg2[%c0_38, %c0_39] : memref<8x72xf32, #tpu.memory_space<vmem>>, vector<8x72xf32>
    %c0_40 = arith.constant 0 : index
    %c0_41 = arith.constant 0 : index
    %77 = vector.load %arg9[%c0_40, %c0_41] : memref<72x256xf32, #tpu.memory_space<vmem>>, vector<72x256xf32>
    %cst_42 = arith.constant dense<0.000000e+00> : vector<8x256xf32>
    %78 = tpu.matmul %76, %77, %cst_42 {dimension_numbers = #tpu.dot_dimension_numbers<[1], [0], [0], [1], [0, 0, 1, 1], [], []>} : vector<8x72xf32>, vector<72x256xf32>, vector<8x256xf32> -> vector<8x256xf32>
    %c0_43 = arith.constant 0 : index
    %c0_44 = arith.constant 0 : index
    %79 = vector.load %arg3[%c0_43, %c0_44] : memref<8x1xf32, #tpu.memory_space<vmem>>, vector<8x1xf32>
    %80 = vector.broadcast %79 : vector<8x1xf32> to vector<8x256xf32>
    %81 = arith.addf %78, %80 : vector<8x256xf32>
    %cst_45 = arith.constant 0.000000e+00 : f32
    %82 = vector.broadcast %cst_45 : f32 to vector<8x256xf32>
    %83 = arith.maximumf %81, %82 : vector<8x256xf32>
    %c0_46 = arith.constant 0 : index
    %c128_47 = arith.constant 128 : index
    %84 = vector.load %arg8[%c0_46, %c128_47] : memref<8x401xf32, #tpu.memory_space<vmem>>, vector<8x256xf32>
    tpu.vector_store %arg8[%c0_46, %c128_47], %83 {strides = array<i32>} : memref<8x401xf32, #tpu.memory_space<vmem>>, vector<8x256xf32>,
    %c0_48 = arith.constant 0 : index
    %c128_49 = arith.constant 128 : index
    %85 = vector.load %arg7[%c0_48, %c128_49] : memref<8x401xf32, #tpu.memory_space<vmem>>, vector<8x256xf32>
    %c0_50 = arith.constant 0 : index
    %c111_51 = arith.constant 111 : index
    %86 = vector.load %arg8[%c0_50, %c111_51] : memref<8x401xf32, #tpu.memory_space<vmem>>, vector<8x256xf32>
    %c0_i32_52 = arith.constant 0 : i32
    %87 = arith.sitofp %c0_i32_52 : i32 to f32
    %88 = vector.shape_cast %18 : vector<1x256xi1> to vector<1x256xi1>
    %89 = vector.broadcast %88 : vector<1x256xi1> to vector<8x256xi1>
    %90 = vector.broadcast %87 : f32 to vector<8x256xf32>
    %91 = arith.select %89, %86, %90 : vector<8x256xi1>, vector<8x256xf32>
    %c0_53 = arith.constant 0 : index
    %c0_54 = arith.constant 0 : index
    %92 = vector.load %arg9[%c0_53, %c0_54] : memref<72x256xf32, #tpu.memory_space<vmem>>, vector<8x256xf32>
    tpu.vector_store %arg9[%c0_53, %c0_54], %91 {strides = array<i32>} : memref<72x256xf32, #tpu.memory_space<vmem>>, vector<8x256xf32>,
    %c0_55 = arith.constant 0 : index
    %c112_56 = arith.constant 112 : index
    %93 = vector.load %arg8[%c0_55, %c112_56] : memref<8x401xf32, #tpu.memory_space<vmem>>, vector<8x256xf32>
    %c8_57 = arith.constant 8 : index
    %c0_58 = arith.constant 0 : index
    %94 = vector.load %arg9[%c8_57, %c0_58] : memref<72x256xf32, #tpu.memory_space<vmem>>, vector<8x256xf32>
    tpu.vector_store %arg9[%c8_57, %c0_58], %93 {strides = array<i32>} : memref<72x256xf32, #tpu.memory_space<vmem>>, vector<8x256xf32>,
    %c0_59 = arith.constant 0 : index
    %c113_60 = arith.constant 113 : index
    %95 = vector.load %arg8[%c0_59, %c113_60] : memref<8x401xf32, #tpu.memory_space<vmem>>, vector<8x256xf32>
    %c0_i32_61 = arith.constant 0 : i32
    %96 = arith.sitofp %c0_i32_61 : i32 to f32
    %97 = vector.shape_cast %20 : vector<1x256xi1> to vector<1x256xi1>
    %98 = vector.broadcast %97 : vector<1x256xi1> to vector<8x256xi1>
    %99 = vector.broadcast %96 : f32 to vector<8x256xf32>
    %100 = arith.select %98, %95, %99 : vector<8x256xi1>, vector<8x256xf32>
    %c16_62 = arith.constant 16 : index
    %c0_63 = arith.constant 0 : index
    %101 = vector.load %arg9[%c16_62, %c0_63] : memref<72x256xf32, #tpu.memory_space<vmem>>, vector<8x256xf32>
    tpu.vector_store %arg9[%c16_62, %c0_63], %100 {strides = array<i32>} : memref<72x256xf32, #tpu.memory_space<vmem>>, vector<8x256xf32>,
    %c0_64 = arith.constant 0 : index
    %c127_65 = arith.constant 127 : index
    %102 = vector.load %arg8[%c0_64, %c127_65] : memref<8x401xf32, #tpu.memory_space<vmem>>, vector<8x256xf32>
    %c0_i32_66 = arith.constant 0 : i32
    %103 = arith.sitofp %c0_i32_66 : i32 to f32
    %104 = vector.shape_cast %18 : vector<1x256xi1> to vector<1x256xi1>
    %105 = vector.broadcast %104 : vector<1x256xi1> to vector<8x256xi1>
    %106 = vector.broadcast %103 : f32 to vector<8x256xf32>
    %107 = arith.select %105, %102, %106 : vector<8x256xi1>, vector<8x256xf32>
    %c24_67 = arith.constant 24 : index
    %c0_68 = arith.constant 0 : index
    %108 = vector.load %arg9[%c24_67, %c0_68] : memref<72x256xf32, #tpu.memory_space<vmem>>, vector<8x256xf32>
    tpu.vector_store %arg9[%c24_67, %c0_68], %107 {strides = array<i32>} : memref<72x256xf32, #tpu.memory_space<vmem>>, vector<8x256xf32>,
    %c0_69 = arith.constant 0 : index
    %c128_70 = arith.constant 128 : index
    %109 = vector.load %arg8[%c0_69, %c128_70] : memref<8x401xf32, #tpu.memory_space<vmem>>, vector<8x256xf32>
    %c32_71 = arith.constant 32 : index
    %c0_72 = arith.constant 0 : index
    %110 = vector.load %arg9[%c32_71, %c0_72] : memref<72x256xf32, #tpu.memory_space<vmem>>, vector<8x256xf32>
    tpu.vector_store %arg9[%c32_71, %c0_72], %109 {strides = array<i32>} : memref<72x256xf32, #tpu.memory_space<vmem>>, vector<8x256xf32>,
    %c0_73 = arith.constant 0 : index
    %c129_74 = arith.constant 129 : index
    %111 = vector.load %arg8[%c0_73, %c129_74] : memref<8x401xf32, #tpu.memory_space<vmem>>, vector<8x256xf32>
    %c0_i32_75 = arith.constant 0 : i32
    %112 = arith.sitofp %c0_i32_75 : i32 to f32
    %113 = vector.shape_cast %20 : vector<1x256xi1> to vector<1x256xi1>
    %114 = vector.broadcast %113 : vector<1x256xi1> to vector<8x256xi1>
    %115 = vector.broadcast %112 : f32 to vector<8x256xf32>
    %116 = arith.select %114, %111, %115 : vector<8x256xi1>, vector<8x256xf32>
    %c40_76 = arith.constant 40 : index
    %c0_77 = arith.constant 0 : index
    %117 = vector.load %arg9[%c40_76, %c0_77] : memref<72x256xf32, #tpu.memory_space<vmem>>, vector<8x256xf32>
    tpu.vector_store %arg9[%c40_76, %c0_77], %116 {strides = array<i32>} : memref<72x256xf32, #tpu.memory_space<vmem>>, vector<8x256xf32>,
    %c0_78 = arith.constant 0 : index
    %c143_79 = arith.constant 143 : index
    %118 = vector.load %arg8[%c0_78, %c143_79] : memref<8x401xf32, #tpu.memory_space<vmem>>, vector<8x256xf32>
    %c0_i32_80 = arith.constant 0 : i32
    %119 = arith.sitofp %c0_i32_80 : i32 to f32
    %120 = vector.shape_cast %18 : vector<1x256xi1> to vector<1x256xi1>
    %121 = vector.broadcast %120 : vector<1x256xi1> to vector<8x256xi1>
    %122 = vector.broadcast %119 : f32 to vector<8x256xf32>
    %123 = arith.select %121, %118, %122 : vector<8x256xi1>, vector<8x256xf32>
    %c48_81 = arith.constant 48 : index
    %c0_82 = arith.constant 0 : index
    %124 = vector.load %arg9[%c48_81, %c0_82] : memref<72x256xf32, #tpu.memory_space<vmem>>, vector<8x256xf32>
    tpu.vector_store %arg9[%c48_81, %c0_82], %123 {strides = array<i32>} : memref<72x256xf32, #tpu.memory_space<vmem>>, vector<8x256xf32>,
    %c0_83 = arith.constant 0 : index
    %c144_84 = arith.constant 144 : index
    %125 = vector.load %arg8[%c0_83, %c144_84] : memref<8x401xf32, #tpu.memory_space<vmem>>, vector<8x256xf32>
    %c56_85 = arith.constant 56 : index
    %c0_86 = arith.constant 0 : index
    %126 = vector.load %arg9[%c56_85, %c0_86] : memref<72x256xf32, #tpu.memory_space<vmem>>, vector<8x256xf32>
    tpu.vector_store %arg9[%c56_85, %c0_86], %125 {strides = array<i32>} : memref<72x256xf32, #tpu.memory_space<vmem>>, vector<8x256xf32>,
    %c0_87 = arith.constant 0 : index
    %c145_88 = arith.constant 145 : index
    %127 = vector.load %arg8[%c0_87, %c145_88] : memref<8x401xf32, #tpu.memory_space<vmem>>, vector<8x256xf32>
    %c0_i32_89 = arith.constant 0 : i32
    %128 = arith.sitofp %c0_i32_89 : i32 to f32
    %129 = vector.shape_cast %20 : vector<1x256xi1> to vector<1x256xi1>
    %130 = vector.broadcast %129 : vector<1x256xi1> to vector<8x256xi1>
    %131 = vector.broadcast %128 : f32 to vector<8x256xf32>
    %132 = arith.select %130, %127, %131 : vector<8x256xi1>, vector<8x256xf32>
    %c64_90 = arith.constant 64 : index
    %c0_91 = arith.constant 0 : index
    %133 = vector.load %arg9[%c64_90, %c0_91] : memref<72x256xf32, #tpu.memory_space<vmem>>, vector<8x256xf32>
    tpu.vector_store %arg9[%c64_90, %c0_91], %132 {strides = array<i32>} : memref<72x256xf32, #tpu.memory_space<vmem>>, vector<8x256xf32>,
    %c0_92 = arith.constant 0 : index
    %c0_93 = arith.constant 0 : index
    %134 = vector.load %arg4[%c0_92, %c0_93] : memref<8x72xf32, #tpu.memory_space<vmem>>, vector<8x72xf32>
    %c0_94 = arith.constant 0 : index
    %c0_95 = arith.constant 0 : index
    %135 = vector.load %arg9[%c0_94, %c0_95] : memref<72x256xf32, #tpu.memory_space<vmem>>, vector<72x256xf32>
    %cst_96 = arith.constant dense<0.000000e+00> : vector<8x256xf32>
    %136 = tpu.matmul %134, %135, %cst_96 {dimension_numbers = #tpu.dot_dimension_numbers<[1], [0], [0], [1], [0, 0, 1, 1], [], []>} : vector<8x72xf32>, vector<72x256xf32>, vector<8x256xf32> -> vector<8x256xf32>
    %c0_97 = arith.constant 0 : index
    %c0_98 = arith.constant 0 : index
    %137 = vector.load %arg5[%c0_97, %c0_98] : memref<8x1xf32, #tpu.memory_space<vmem>>, vector<8x1xf32>
    %138 = vector.broadcast %137 : vector<8x1xf32> to vector<8x256xf32>
    %139 = arith.addf %136, %138 : vector<8x256xf32>
    %140 = arith.addf %139, %85 : vector<8x256xf32>
    %cst_99 = arith.constant 0.000000e+00 : f32
    %141 = vector.broadcast %cst_99 : f32 to vector<8x256xf32>
    %142 = arith.maximumf %140, %141 : vector<8x256xf32>
    %143 = vector.extract_strided_slice %142 {offsets = [0, 0], sizes = [4, 256], strides = [1, 1]} : vector<8x256xf32> to vector<4x256xf32>
    %c0_100 = arith.constant 0 : index
    %c0_101 = arith.constant 0 : index
    %c0_102 = arith.constant 0 : index
    %144 = vector.load %arg6[%c0_100, %c0_101, %c0_102] : memref<1x4x256xf32, #tpu.memory_space<vmem>>, vector<1x4x256xf32>
    %145 = vector.shape_cast %144 : vector<1x4x256xf32> to vector<4x256xf32>
    %146 = vector.shape_cast %143 : vector<4x256xf32> to vector<1x4x256xf32>
    tpu.vector_store %arg6[%c0_100, %c0_101, %c0_102], %146 {strides = array<i32>} : memref<1x4x256xf32, #tpu.memory_space<vmem>>, vector<1x4x256xf32>,
    return
  }
  func.func @transform_0(%arg0: i32) -> (i32, i32, i32) {
    %c0_i32 = arith.constant 0 : i32
    %c0_i32_0 = arith.constant 0 : i32
    %c0_i32_1 = arith.constant 0 : i32
    return %arg0, %c0_i32, %c0_i32_0 : i32, i32, i32
  }
  func.func @transform_1(%arg0: i32) -> (i32, i32) {
    %c0_i32 = arith.constant 0 : i32
    %c0_i32_0 = arith.constant 0 : i32
    %c0_i32_1 = arith.constant 0 : i32
    return %c0_i32, %c0_i32_0 : i32, i32
  }
  func.func @transform_2(%arg0: i32) -> (i32, i32) {
    %c0_i32 = arith.constant 0 : i32
    %c0_i32_0 = arith.constant 0 : i32
    %c0_i32_1 = arith.constant 0 : i32
    return %c0_i32, %c0_i32_0 : i32, i32
  }
  func.func @transform_3(%arg0: i32) -> (i32, i32) {
    %c0_i32 = arith.constant 0 : i32
    %c0_i32_0 = arith.constant 0 : i32
    %c0_i32_1 = arith.constant 0 : i32
    return %c0_i32, %c0_i32_0 : i32, i32
  }
  func.func @transform_4(%arg0: i32) -> (i32, i32) {
    %c0_i32 = arith.constant 0 : i32
    %c0_i32_0 = arith.constant 0 : i32
    %c0_i32_1 = arith.constant 0 : i32
    return %c0_i32, %c0_i32_0 : i32, i32
  }
  func.func @transform_5(%arg0: i32) -> (i32, i32, i32) {
    %c0_i32 = arith.constant 0 : i32
    %c0_i32_0 = arith.constant 0 : i32
    %c0_i32_1 = arith.constant 0 : i32
    return %arg0, %c0_i32, %c0_i32_0 : i32, i32, i32
  }
}

</mosaic_0001>

<llo_original>
// kernel: tpu_custom_call.1
$region0: #{tpu_custom_call.1}
  #allocation0 [shape = 'u32[]', space=smem, size = 0x4, offset = 0x4, fixed_abs, tag = 'smem constant byte address 0x4 - core index']
  #allocation1 [shape = 'u32[72,128]{1,0:T(1,128)}', space=vmem, size = 0x9000, scoped, tag = 'internal scratch']
  #allocation2 [shape = 'f32[8,401]{1,0:T(8,128)}', space=vmem, size = 0x4000, scoped, tag = 'scratch operand']
  #allocation3 [shape = 'f32[8,401]{1,0:T(8,128)}', space=vmem, size = 0x4000, scoped, tag = 'scratch operand']
  #allocation4 [shape = 'f32[72,256]{1,0:T(8,128)}', space=vmem, size = 0x12000, scoped, tag = 'scratch operand']
  %s0 = inlined_call_operand.vmem [shape: f32[2,4,256], index: 0, kind: input, shape index: {}]
  %s1 = inlined_call_operand.hbm [shape: f32[8,72], index: 1, kind: input, shape index: {}]
  %s2 = inlined_call_operand.vmem [shape: f32[8,1], index: 2, kind: input, shape index: {}]
  %s3 = inlined_call_operand.hbm [shape: f32[8,72], index: 3, kind: input, shape index: {}]
  %s4 = inlined_call_operand.vmem [shape: f32[8,1], index: 4, kind: input, shape index: {}]
  %s5 = inlined_call_operand.hbm [shape: f32[2,4,256], index: 5, kind: output, shape index: {}]
  %s6 = sld [smem:[#allocation0]]
  $region61: #{tpu_custom_call.1} parent=0
    _
  %s8 = ssub.s32 1, %s6
  %s9 = scalar_select 0, %s8, %s6
  $region1: #{tpu_custom_call.1} parent=0
    #allocation5 [shape = 'u8[4096]{0}', space=vmem, size = 0x1000, scoped, tag = 'input window, operand 1, single buffered']
    #allocation6 [shape = 's32[2]{0}', space=sflag, size = 0x8, scoped, tag = 'scoped memory for tpu_custom_call.1']
    #allocation7 [shape = 's32[2]{0}', space=sflag, size = 0x8, scoped, tag = 'scoped memory for tpu_custom_call.1']
    #allocation8 [shape = 'u8[4096]{0}', space=vmem, size = 0x1000, scoped, tag = 'input window, operand 3, single buffered']
    #allocation9 [shape = 's32[1]{0}', space=sflag, size = 0x4, scoped, tag = 'scoped memory for tpu_custom_call.1']
    #allocation10 [shape = 'u8[8192]{0}', space=vmem, size = 0x2000, scoped, tag = 'output window, operand 0']
    %10 = vsyncpa [#allocation6], 0
    %11 = vsyncpa [#allocation9], 0
    %12 = vsyncpa [#allocation7], 0
    %s13 = scalar_lea.sflag [#allocation7], 1
    %14 = vsyncpa %s13, 0
    loop: start=0, step=1, limit=4
    $region2: #{tpu_custom_call.1} parent=1 // loop_pre_header
      _
    $region3: #{tpu_custom_call.1} parent=1 // loop_header
      %s16 = sphi 0, %s20
      %p17 = scmp.ge.s32.totalorder %s16, 4
      %s26 = sphi 0, %s28
      %s29 = sphi 0, %s26
      %s30 = sphi 0, %s29
      %s46 = sphi 0, %s30
      %s50 = sphi 0, %s50
      %s52 = sphi 0, %s50
      %s53 = sphi 0, %s52
      %s67 = sphi 0, %s53
      %s71 = sphi 0, %s71
      %s73 = sphi 0, %s71
      %s74 = sphi 0, %s73
      %s88 = sphi 0, %s74
      %s92 = sphi 0, %s92
      %s94 = sphi 0, %s92
      %s95 = sphi 0, %s94
      %s109 = sphi 0, %s95
      %s113 = sphi 0, %s113
      %s115 = sphi 0, %s113
      %s116 = sphi 0, %s115
      %s130 = sphi 0, %s116
      %s136 = sphi 0, %s138
      %s139 = sphi 0, %s136
      %s140 = sphi 0, %s139
      %s156 = sphi 0, %s140
    $region4: #{tpu_custom_call.1} parent=1 // loop_header_branch
      %19 = sbr.rel (%p17) target = $region8
    $region5: #{tpu_custom_call.1} parent=1 // loop_body
      %s21 = ssub.s32 %s16, 1
      %s22 = ssub.s32 %s16, 2
      %s23 = sadd.s32 %s16, 1
      %s24 = ssub.s32 %s16, %s23
      %p25 = scmp.eq.s32.totalorder %s24, 0
      %s27 = sadd.s32 %s26, 1
      %s28 = scalar_select %p25, %s26, %s27
      %p31 = pneg %p25
      %p32 = scmp.eq.s32.totalorder %s16, 1
      %p33 = por %p31, %p32
      %p34 = scmp.ne.s32.totalorder %s26, %s29
      %p35 = scmp.eq.s32.totalorder %s16, 0
      %p36 = por %p34, %p35
      %p37 = scmp.ne.s32.totalorder %s26, %s29
      %p38 = scmp.eq.s32.totalorder %s21, 1
      %p39 = por %p37, %p38
      %p40 = scmp.ne.s32.totalorder %s29, %s30
      %p41 = scmp.eq.s32.totalorder %s21, 0
      %p42 = por %p40, %p41
      %p43 = scmp.ne.s32.totalorder %s29, %s30
      %p44 = scmp.eq.s32.totalorder %s22, 1
      %p45 = por %p43, %p44
      %p47 = scmp.ne.s32.totalorder %s30, %s46
      %p48 = scmp.eq.s32.totalorder %s22, 0
      %p49 = por %p47, %p48
      %s51 = sadd.s32 %s50, 1
      %p54 = scmp.eq.s32.totalorder %s16, 1
      %p55 = scmp.ne.s32.totalorder %s50, %s52
      %p56 = scmp.eq.s32.totalorder %s16, 0
      %p57 = por %p55, %p56
      %p58 = scmp.ne.s32.totalorder %s50, %s52
      %p59 = scmp.eq.s32.totalorder %s21, 1
      %p60 = por %p58, %p59
      %p61 = scmp.ne.s32.totalorder %s52, %s53
      %p62 = scmp.eq.s32.totalorder %s21, 0
      %p63 = por %p61, %p62
      %p64 = scmp.ne.s32.totalorder %s52, %s53
      %p65 = scmp.eq.s32.totalorder %s22, 1
      %p66 = por %p64, %p65
      %p68 = scmp.ne.s32.totalorder %s53, %s67
      %p69 = scmp.eq.s32.totalorder %s22, 0
      %p70 = por %p68, %p69
      %s72 = sadd.s32 %s71, 1
      %p75 = scmp.eq.s32.totalorder %s16, 1
      %p76 = scmp.ne.s32.totalorder %s71, %s73
      %p77 = scmp.eq.s32.totalorder %s16, 0
      %p78 = por %p76, %p77
      %p79 = scmp.ne.s32.totalorder %s71, %s73
      %p80 = scmp.eq.s32.totalorder %s21, 1
      %p81 = por %p79, %p80
      %p82 = scmp.ne.s32.totalorder %s73, %s74
      %p83 = scmp.eq.s32.totalorder %s21, 0
      %p84 = por %p82, %p83
      %p85 = scmp.ne.s32.totalorder %s73, %s74
      %p86 = scmp.eq.s32.totalorder %s22, 1
      %p87 = por %p85, %p86
      %p89 = scmp.ne.s32.totalorder %s74, %s88
      %p90 = scmp.eq.s32.totalorder %s22, 0
      %p91 = por %p89, %p90
      %s93 = sadd.s32 %s92, 1
      %p96 = scmp.eq.s32.totalorder %s16, 1
      %p97 = scmp.ne.s32.totalorder %s92, %s94
      %p98 = scmp.eq.s32.totalorder %s16, 0
      %p99 = por %p97, %p98
      %p100 = scmp.ne.s32.totalorder %s92, %s94
      %p101 = scmp.eq.s32.totalorder %s21, 1
      %p102 = por %p100, %p101
      %p103 = scmp.ne.s32.totalorder %s94, %s95
      %p104 = scmp.eq.s32.totalorder %s21, 0
      %p105 = por %p103, %p104
      %p106 = scmp.ne.s32.totalorder %s94, %s95
      %p107 = scmp.eq.s32.totalorder %s22, 1
      %p108 = por %p106, %p107
      %p110 = scmp.ne.s32.totalorder %s95, %s109
      %p111 = scmp.eq.s32.totalorder %s22, 0
      %p112 = por %p110, %p111
      %s114 = sadd.s32 %s113, 1
      %p117 = scmp.eq.s32.totalorder %s16, 1
      %p118 = scmp.ne.s32.totalorder %s113, %s115
      %p119 = scmp.eq.s32.totalorder %s16, 0
      %p120 = por %p118, %p119
      %p121 = scmp.ne.s32.totalorder %s113, %s115
      %p122 = scmp.eq.s32.totalorder %s21, 1
      %p123 = por %p121, %p122
      %p124 = scmp.ne.s32.totalorder %s115, %s116
      %p125 = scmp.eq.s32.totalorder %s21, 0
      %p126 = por %p124, %p125
      %p127 = scmp.ne.s32.totalorder %s115, %s116
      %p128 = scmp.eq.s32.totalorder %s22, 1
      %p129 = por %p127, %p128
      %p131 = scmp.ne.s32.totalorder %s116, %s130
      %p132 = scmp.eq.s32.totalorder %s22, 0
      %p133 = por %p131, %p132
      %s134 = ssub.s32 %s16, %s23
      %p135 = scmp.eq.s32.totalorder %s134, 0
      %s137 = sadd.s32 %s136, 1
      %s138 = scalar_select %p135, %s136, %s137
      %p141 = pneg %p135
      %p142 = scmp.eq.s32.totalorder %s16, 1
      %p143 = por %p141, %p142
      %p144 = scmp.ne.s32.totalorder %s136, %s139
      %p145 = scmp.eq.s32.totalorder %s16, 0
      %p146 = por %p144, %p145
      %p147 = scmp.ne.s32.totalorder %s136, %s139
      %p148 = scmp.eq.s32.totalorder %s21, 1
      %p149 = por %p147, %p148
      %p150 = scmp.ne.s32.totalorder %s139, %s140
      %p151 = scmp.eq.s32.totalorder %s21, 0
      %p152 = por %p150, %p151
      %p153 = scmp.ne.s32.totalorder %s139, %s140
      %p154 = scmp.eq.s32.totalorder %s22, 1
      %p155 = por %p153, %p154
      %p157 = scmp.ne.s32.totalorder %s140, %s156
      %p158 = scmp.eq.s32.totalorder %s22, 0
      %p159 = por %p157, %p158
      %p160 = scmp.le.s32.totalorder 1, %s16
      %p161 = scmp.lt.s32.totalorder %s16, 3
      %p162 = pnand %p160, %p161
      %p163 = pneg %p162
      // Predicated region
      $region9: #{tpu_custom_call.1} parent=5 // pred_check
        _
      $region10: #{tpu_custom_call.1} parent=5 // pred_check_branch
        %165 = sbr.rel (%p162) target = $region12
      $region11: #{tpu_custom_call.1} parent=5 // pred_region
        %s166 = ssub.s32 %s16, 1
        // Predicated region
        $region13: #{tpu_custom_call.1} parent=11 // pred_check
          %p167 = pneg %p63
        $region14: #{tpu_custom_call.1} parent=11 // pred_check_branch
          %169 = sbr.rel (%p167) target = $region16
        $region15: #{tpu_custom_call.1} parent=11 // pred_region
          %171 = vsyncadd [#allocation6], 0
          %s173 = sshll.u32 %s1, 4
          %s174 = int_to_ptr.hbm [resolvable:$true] %s173
          %s175 = sshll.u32 [#allocation5], 4
          %s176 = int_to_ptr.vmem [resolvable:$true] %s175
          %178 = dma.hbm_to_vmem [thread:$0]  %s174, 128, %s176, [#allocation6]
        $region16: #{tpu_custom_call.1} parent=11 // pred_fallthru
          _
        // Predicated region
        $region17: #{tpu_custom_call.1} parent=11 // pred_check
          %p179 = pneg %p84
        $region18: #{tpu_custom_call.1} parent=11 // pred_check_branch
          %181 = sbr.rel (%p179) target = $region20
        $region19: #{tpu_custom_call.1} parent=11 // pred_region
          _
        $region20: #{tpu_custom_call.1} parent=11 // pred_fallthru
          _
        // Predicated region
        $region21: #{tpu_custom_call.1} parent=11 // pred_check
          %p182 = pneg %p105
        $region22: #{tpu_custom_call.1} parent=11 // pred_check_branch
          %184 = sbr.rel (%p182) target = $region24
        $region23: #{tpu_custom_call.1} parent=11 // pred_region
          %186 = vsyncadd [#allocation9], 0
          %s188 = sshll.u32 %s3, 4
          %s189 = int_to_ptr.hbm [resolvable:$true] %s188
          %s190 = sshll.u32 [#allocation8], 4
          %s191 = int_to_ptr.vmem [resolvable:$true] %s190
          %193 = dma.hbm_to_vmem [thread:$0]  %s189, 128, %s191, [#allocation9]
        $region24: #{tpu_custom_call.1} parent=11 // pred_fallthru
          _
        // Predicated region
        $region25: #{tpu_custom_call.1} parent=11 // pred_check
          %p194 = pneg %p126
        $region26: #{tpu_custom_call.1} parent=11 // pred_check_branch
          %196 = sbr.rel (%p194) target = $region28
        $region27: #{tpu_custom_call.1} parent=11 // pred_region
          _
        $region28: #{tpu_custom_call.1} parent=11 // pred_fallthru
          _
      $region12: #{tpu_custom_call.1} parent=5 // pred_fallthru
        _
      %p197 = scmp.lt.s32.totalorder %s16, 2
      // Predicated region
      $region29: #{tpu_custom_call.1} parent=5 // pred_check
        %p198 = pneg %p197
      $region30: #{tpu_custom_call.1} parent=5 // pred_check_branch
        %200 = sbr.rel (%p198) target = $region32
      $region31: #{tpu_custom_call.1} parent=5 // pred_region
        // Predicated region
        $region33: #{tpu_custom_call.1} parent=31 // pred_check
          %p201 = pneg %p36
        $region34: #{tpu_custom_call.1} parent=31 // pred_check_branch
          %203 = sbr.rel (%p201) target = $region36
        $region35: #{tpu_custom_call.1} parent=31 // pred_region
          %p204 = scmp.lt.s32.totalorder %s16, 1
          %s205 = scalar_select %p204, %s16, 1
          %s206 = smul.addr %s205, 2
          %s207 = smul.addr %s206, 4
          %s208 = scalar_lea.vmem %s0, %s207
        $region36: #{tpu_custom_call.1} parent=31 // pred_fallthru
          _
      $region32: #{tpu_custom_call.1} parent=5 // pred_fallthru
        _
      %p209 = scmp.le.s32.totalorder 1, %s16
      %p210 = scmp.lt.s32.totalorder %s16, 3
      %p211 = pnand %p209, %p210
      %p212 = pneg %p211
      // Predicated region
      $region37: #{tpu_custom_call.1} parent=5 // pred_check
        _
      $region38: #{tpu_custom_call.1} parent=5 // pred_check_branch
        %214 = sbr.rel (%p211) target = $region40
      $region39: #{tpu_custom_call.1} parent=5 // pred_region
        %s215 = ssub.s32 %s16, 1
        // Predicated region
        $region41: #{tpu_custom_call.1} parent=39 // pred_check
          %p216 = pneg %p63
        $region42: #{tpu_custom_call.1} parent=39 // pred_check_branch
          %218 = sbr.rel (%p216) target = $region44
        $region43: #{tpu_custom_call.1} parent=39 // pred_region
          %220 = dma.done [#allocation6], 128
        $region44: #{tpu_custom_call.1} parent=39 // pred_fallthru
          _
        // Predicated region
        $region45: #{tpu_custom_call.1} parent=39 // pred_check
          %p221 = pneg %p105
        $region46: #{tpu_custom_call.1} parent=39 // pred_check_branch
          %223 = sbr.rel (%p221) target = $region48
        $region47: #{tpu_custom_call.1} parent=39 // pred_region
          %225 = dma.done [#allocation9], 128
        $region48: #{tpu_custom_call.1} parent=39 // pred_fallthru
          _
        %p226 = scmp.lt.s32.totalorder %s21, 1
        %s227 = scalar_select %p226, %s21, 1
        %s228 = smul.addr %s227, 2
        %s229 = smul.addr %s228, 4
        %s230 = scalar_lea.vmem %s0, %s229
        %p231 = pneg %p42
        %p232 = pneg %p39
        %p233 = pneg %p63
        %p234 = pneg %p60
        %p235 = pneg %p84
        %p236 = pneg %p81
        %p237 = pneg %p105
        %p238 = pneg %p102
        %p239 = pneg %p126
        %p240 = pneg %p123
        %p241 = pneg %p152
        %p242 = pneg %p149
        %s243 = sand.u32 %s139, 1
        %s244 = scalar_lea.sflag [#allocation7], %s243
        %s245 = sand.u32 %s139, 1
        %s246 = smul.addr %s245, 8
        %s247 = scalar_lea.vmem [#allocation10], %s246
        %p248 = scmp.lt.s32.totalorder %s21, 1
        %s249 = scalar_select %p248, %s21, 1
        %s250 = smul.addr %s249, 2
        %s251 = smul.addr %s250, 4
        %s252 = scalar_lea.vmem %s0, %s251
        %v253 = vlaneseq
        %v254 = vand.u32 %v253, 127
        %v255 = vadd.s32 %v254, 128
        %vm256 = vcmp.lt.s32.totalorder %v254, 0
        %v257 = vsub.s32 0, %v254
        %v258 = vsel %vm256, %v257, %v254
        %v259 = vshrl.u32 %v258, 4
        %v260 = vand.u32 %v258, 15
        %v261 = vsub.s32 0, %v260
        %v262 = vsel %vm256, %v261, %v260
        %vm263 = vcmp.lt.s32.totalorder %v255, 0
        %v264 = vsub.s32 0, %v255
        %v265 = vsel %vm263, %v264, %v255
        %v266 = vshrl.u32 %v265, 4
        %v267 = vand.u32 %v265, 15
        %v268 = vsub.s32 0, %v267
        %v269 = vsel %vm263, %v268, %v267
        %vm270 = vcmp.ne.s32.totalorder %v262, 0
        %vm271 = vcmp.ne.s32.totalorder %v269, 0
        %vm272 = vcmp.lt.s32.totalorder %v262, 0
        %vm273 = vcmp.lt.s32.totalorder %v269, 0
        %vm274 = vmand %vm272, %vm270
        %vm275 = vmand %vm273, %vm271
        %v276 = vadd.s32 %v262, 16
        %v277 = vadd.s32 %v269, 16
        %v278 = vsel %vm274, %v276, %v262
        %v279 = vsel %vm275, %v277, %v269
        %vm280 = vcmp.ne.s32.totalorder %v278, 0
        %vm281 = vcmp.ne.s32.totalorder %v279, 0
        %vm282 = vcmp.ne.s32.totalorder %v278, 15
        %vm283 = vcmp.ne.s32.totalorder %v279, 15
        %284 = vst [vmem:[#allocation2] sm:$0xff] 0.0
        %285 = vst [vmem:[#allocation2 + $0x8] sm:$0xff] 0.0
        %286 = vst [vmem:[#allocation2 + $0x10] sm:$0xff] 0.0
        %vm287 = vcmask 138240
        %288 = vst.msk [vmem:[#allocation2 + $0x18] sm:$0xff] %vm287, 0.0
        %289 = vst [vmem:[#allocation3] sm:$0xff] 0.0
        %290 = vst [vmem:[#allocation3 + $0x8] sm:$0xff] 0.0
        %291 = vst [vmem:[#allocation3 + $0x10] sm:$0xff] 0.0
        %292 = vst.msk [vmem:[#allocation3 + $0x18] sm:$0xff] %vm287, 0.0
        %v293 = vld [vmem:[%s252] sm:$0xff]
        %295 = vst [vmem:[#allocation1] ss:$2 sm:$0xff] %v293
        %v296 = vld.sshfl [vmem:[#allocation1] sm:$0xff pattern:$0x75316420]
        %v297 = vld.sshfl [vmem:[#allocation1 + $0x8] sm:$0xff pattern:$0x75316420]
        %300 = vst [vmem:[#allocation2 + $0x8] sm:$0xf] %v296
        %301 = vst [vmem:[#allocation2 + $0x10] sm:$0xf] %v297
        %v302 = vld [vmem:[#allocation2] sm:$0xff]
        %v303 = vld [vmem:[#allocation2 + $0x8] sm:$0xff]
        %v304 = vld [vmem:[#allocation2 + $0x10] sm:$0xff]
        %v305 = vsel %vm280, 1, 0
        %v306 = vsel %vm281, 1, 0
        %vm307 = vcmp.eq.s32.totalorder %v305, 1
        %vm308 = vcmp.eq.s32.totalorder %v306, 1
        %312 = vrot.lane.b32.xlu0 %v302, 17
        %v313 = vpop.permute.xlu0 %312
        %314 = vrot.lane.b32.xlu0 %v303, 17
        %v315 = vpop.permute.xlu0 %314
        %316 = vrot.lane.b32.xlu0 %v304, 17
        %v317 = vpop.permute.xlu0 %316
        %v318 = vsel %vm287, %v313, %v315
        %v319 = vsel %vm287, %v315, %v317
        %v322 = vsel %vm307, %v318, 0.0
        %v323 = vsel %vm308, %v319, 0.0
        %324 = vst [vmem:[#allocation4] sm:$0xff] %v322
        %325 = vst [vmem:[#allocation4 + $0x8] sm:$0xff] %v323
        %v326 = vld [vmem:[#allocation2] sm:$0xff]
        %v327 = vld [vmem:[#allocation2 + $0x8] sm:$0xff]
        %v328 = vld [vmem:[#allocation2 + $0x10] sm:$0xff]
        %332 = vrot.lane.b32.xlu0 %v326, 16
        %v333 = vpop.permute.xlu0 %332
        %334 = vrot.lane.b32.xlu0 %v327, 16
        %v335 = vpop.permute.xlu0 %334
        %336 = vrot.lane.b32.xlu0 %v328, 16
        %v337 = vpop.permute.xlu0 %336
        %vm338 = vcmask 130048
        %v339 = vsel %vm338, %v333, %v335
        %v340 = vsel %vm338, %v335, %v337
        %343 = vst [vmem:[#allocation4 + $0x10] sm:$0xff] %v339
        %344 = vst [vmem:[#allocation4 + $0x18] sm:$0xff] %v340
        %v345 = vld [vmem:[#allocation2] sm:$0xff]
        %v346 = vld [vmem:[#allocation2 + $0x8] sm:$0xff]
        %v347 = vld [vmem:[#allocation2 + $0x10] sm:$0xff]
        %v348 = vsel %vm282, 1, 0
        %v349 = vsel %vm283, 1, 0
        %vm350 = vcmp.eq.s32.totalorder %v348, 1
        %vm351 = vcmp.eq.s32.totalorder %v349, 1
        %355 = vrot.lane.b32.xlu0 %v345, 15
        %v356 = vpop.permute.xlu0 %355
        %357 = vrot.lane.b32.xlu0 %v346, 15
        %v358 = vpop.permute.xlu0 %357
        %359 = vrot.lane.b32.xlu0 %v347, 15
        %v360 = vpop.permute.xlu0 %359
        %vm361 = vcmask 121856
        %v362 = vsel %vm361, %v356, %v358
        %v363 = vsel %vm361, %v358, %v360
        %v366 = vsel %vm350, %v362, 0.0
        %v367 = vsel %vm351, %v363, 0.0
        %368 = vst [vmem:[#allocation4 + $0x20] sm:$0xff] %v366
        %369 = vst [vmem:[#allocation4 + $0x28] sm:$0xff] %v367
        %v370 = vld [vmem:[#allocation2] sm:$0xff]
        %v371 = vld [vmem:[#allocation2 + $0x8] sm:$0xff]
        %v372 = vld [vmem:[#allocation2 + $0x10] sm:$0xff]
        %376 = vrot.lane.b32.xlu0 %v370, 1
        %v377 = vpop.permute.xlu0 %376
        %378 = vrot.lane.b32.xlu0 %v371, 1
        %v379 = vpop.permute.xlu0 %378
        %380 = vrot.lane.b32.xlu0 %v372, 1
        %v381 = vpop.permute.xlu0 %380
        %vm382 = vcmask 7168
        %v383 = vsel %vm382, %v377, %v379
        %v384 = vsel %vm382, %v379, %v381
        %v387 = vsel %vm307, %v383, 0.0
        %v388 = vsel %vm308, %v384, 0.0
        %389 = vst [vmem:[#allocation4 + $0x30] sm:$0xff] %v387
        %390 = vst [vmem:[#allocation4 + $0x38] sm:$0xff] %v388
        %v391 = vld [vmem:[#allocation2 + $0x8] sm:$0xff]
        %v392 = vld [vmem:[#allocation2 + $0x10] sm:$0xff]
        %393 = vst [vmem:[#allocation4 + $0x40] sm:$0xff] %v391
        %394 = vst [vmem:[#allocation4 + $0x48] sm:$0xff] %v392
        %v395 = vld [vmem:[#allocation2 + $0x8] sm:$0xff]
        %v396 = vld [vmem:[#allocation2 + $0x10] sm:$0xff]
        %v397 = vld [vmem:[#allocation2 + $0x18] sm:$0xff]
        %401 = vrot.lane.b32.xlu0 %v395, 127
        %v402 = vpop.permute.xlu0 %401
        %403 = vrot.lane.b32.xlu0 %v396, 127
        %v404 = vpop.permute.xlu0 %403
        %405 = vrot.lane.b32.xlu0 %v397, 127
        %v406 = vpop.permute.xlu0 %405
        %vm407 = vcmask 1039360
        %v408 = vsel %vm407, %v402, %v404
        %v409 = vsel %vm407, %v404, %v406
        %v412 = vsel %vm350, %v408, 0.0
        %v413 = vsel %vm351, %v409, 0.0
        %414 = vst [vmem:[#allocation4 + $0x50] sm:$0xff] %v412
        %415 = vst [vmem:[#allocation4 + $0x58] sm:$0xff] %v413
        %v416 = vld [vmem:[#allocation2 + $0x8] sm:$0xff]
        %v417 = vld [vmem:[#allocation2 + $0x10] sm:$0xff]
        %v418 = vld [vmem:[#allocation2 + $0x18] sm:$0xff]
        %422 = vrot.lane.b32.xlu0 %v416, 113
        %v423 = vpop.permute.xlu0 %422
        %424 = vrot.lane.b32.xlu0 %v417, 113
        %v425 = vpop.permute.xlu0 %424
        %426 = vrot.lane.b32.xlu0 %v418, 113
        %v427 = vpop.permute.xlu0 %426
        %vm428 = vcmask 924672
        %v429 = vsel %vm428, %v423, %v425
        %v430 = vsel %vm428, %v425, %v427
        %v433 = vsel %vm307, %v429, 0.0
        %v434 = vsel %vm308, %v430, 0.0
        %435 = vst [vmem:[#allocation4 + $0x60] sm:$0xff] %v433
        %436 = vst [vmem:[#allocation4 + $0x68] sm:$0xff] %v434
        %v437 = vld [vmem:[#allocation2 + $0x8] sm:$0xff]
        %v438 = vld [vmem:[#allocation2 + $0x10] sm:$0xff]
        %v439 = vld [vmem:[#allocation2 + $0x18] sm:$0xff]
        %443 = vrot.lane.b32.xlu0 %v437, 112
        %v444 = vpop.permute.xlu0 %443
        %445 = vrot.lane.b32.xlu0 %v438, 112
        %v446 = vpop.permute.xlu0 %445
        %447 = vrot.lane.b32.xlu0 %v439, 112
        %v448 = vpop.permute.xlu0 %447
        %vm449 = vcmask 916480
        %v450 = vsel %vm449, %v444, %v446
        %v451 = vsel %vm449, %v446, %v448
        %454 = vst [vmem:[#allocation4 + $0x70] sm:$0xff] %v450
        %455 = vst [vmem:[#allocation4 + $0x78] sm:$0xff] %v451
        %v456 = vld [vmem:[#allocation2 + $0x8] sm:$0xff]
        %v457 = vld [vmem:[#allocation2 + $0x10] sm:$0xff]
        %v458 = vld [vmem:[#allocation2 + $0x18] sm:$0xff]
        %462 = vrot.lane.b32.xlu0 %v456, 111
        %v463 = vpop.permute.xlu0 %462
        %464 = vrot.lane.b32.xlu0 %v457, 111
        %v465 = vpop.permute.xlu0 %464
        %466 = vrot.lane.b32.xlu0 %v458, 111
        %v467 = vpop.permute.xlu0 %466
        %vm468 = vcmask 908288
        %v469 = vsel %vm468, %v463, %v465
        %v470 = vsel %vm468, %v465, %v467
        %v473 = vsel %vm350, %v469, 0.0
        %v474 = vsel %vm351, %v470, 0.0
        %475 = vst [vmem:[#allocation4 + $0x80] sm:$0xff] %v473
        %476 = vst [vmem:[#allocation4 + $0x88] sm:$0xff] %v474
        %v477 = vld [vmem:[#allocation5] sm:$0xff]
        %v478 = vld [vmem:[#allocation4] sm:$0xff]
        %v479 = vld [vmem:[#allocation4 + $0x8] sm:$0xff]
        %v480 = vld [vmem:[#allocation4 + $0x10] sm:$0xff]
        %v481 = vld [vmem:[#allocation4 + $0x18] sm:$0xff]
        %v482 = vld [vmem:[#allocation4 + $0x20] sm:$0xff]
        %v483 = vld [vmem:[#allocation4 + $0x28] sm:$0xff]
        %v484 = vld [vmem:[#allocation4 + $0x30] sm:$0xff]
        %v485 = vld [vmem:[#allocation4 + $0x38] sm:$0xff]
        %v486 = vld [vmem:[#allocation4 + $0x40] sm:$0xff]
        %v487 = vld [vmem:[#allocation4 + $0x48] sm:$0xff]
        %v488 = vld [vmem:[#allocation4 + $0x50] sm:$0xff]
        %v489 = vld [vmem:[#allocation4 + $0x58] sm:$0xff]
        %v490 = vld [vmem:[#allocation4 + $0x60] sm:$0xff]
        %v491 = vld [vmem:[#allocation4 + $0x68] sm:$0xff]
        %v492 = vld [vmem:[#allocation4 + $0x70] sm:$0xff]
        %v493 = vld [vmem:[#allocation4 + $0x78] sm:$0xff]
        %v494 = vld [vmem:[#allocation4 + $0x80] sm:$0xff]
        %v495 = vld [vmem:[#allocation4 + $0x88] sm:$0xff]
        %v496 = vld [vmem:[%s2] sm:$0xff]
        %498 = vset.pattern.permute.xlu0 0
        %499 = vperm.xlu0 %498, %v496
        %v500 = vpop.permute.xlu0 %499
        %vm502 = vcmask 588800
        %v504 = vsel %vm502, %v477, 0
        %506 = vmatpush.msra.mxu0 0.0
        %507 = vmatpush.msra.mxu0 0.0
        %508 = vmatpush.msra.mxu0 0.0
        %509 = vmatpush.msra.mxu0 0.0
        %510 = vmatpush.msra.mxu0 0.0
        %511 = vmatpush.msra.mxu0 0.0
        %512 = vmatpush.msra.mxu0 0.0
        %513 = vmatpush.msra.mxu0 %v494
        %514 = vmatpush.msra.mxu0 %v492
        %515 = vmatpush.msra.mxu0 %v490
        %516 = vmatpush.msra.mxu0 %v488
        %517 = vmatpush.msra.mxu0 %v486
        %518 = vmatpush.msra.mxu0 %v484
        %519 = vmatpush.msra.mxu0 %v482
        %520 = vmatpush.msra.mxu0 %v480
        %521 = vmatpush.msra.mxu0 %v478
        %522 = vmatmul.f32.gmra.mxu0 %v504
        %v523 = vpop.f32.mrf.mxu0
        %v524 = vadd.f32 %v500, %v523
        %525 = vdwg.mxu0
        %526 = vmatpush.msra.mxu0 0.0
        %527 = vmatpush.msra.mxu0 0.0
        %528 = vmatpush.msra.mxu0 0.0
        %529 = vmatpush.msra.mxu0 0.0
        %530 = vmatpush.msra.mxu0 0.0
        %531 = vmatpush.msra.mxu0 0.0
        %532 = vmatpush.msra.mxu0 0.0
        %533 = vmatpush.msra.mxu0 %v495
        %534 = vmatpush.msra.mxu0 %v493
        %535 = vmatpush.msra.mxu0 %v491
        %536 = vmatpush.msra.mxu0 %v489
        %537 = vmatpush.msra.mxu0 %v487
        %538 = vmatpush.msra.mxu0 %v485
        %539 = vmatpush.msra.mxu0 %v483
        %540 = vmatpush.msra.mxu0 %v481
        %541 = vmatpush.msra.mxu0 %v479
        %542 = vmatmul.f32.gmra.mxu0 %v504
        %v543 = vpop.f32.mrf.mxu0
        %v544 = vadd.f32 %v500, %v543
        %545 = vdwg.mxu0
        %v546 = vmax.f32 %v524, 0.0
        %v547 = vmax.f32 %v544, 0.0
        %548 = vst [vmem:[#allocation3 + $0x8] sm:$0xff] %v546
        %549 = vst [vmem:[#allocation3 + $0x10] sm:$0xff] %v547
        %v550 = vld [vmem:[#allocation2 + $0x8] sm:$0xff]
        %v551 = vld [vmem:[#allocation2 + $0x10] sm:$0xff]
        %v552 = vld [vmem:[#allocation3] sm:$0xff]
        %v553 = vld [vmem:[#allocation3 + $0x8] sm:$0xff]
        %v554 = vld [vmem:[#allocation3 + $0x10] sm:$0xff]
        %558 = vrot.lane.b32.xlu0 %v552, 17
        %v559 = vpop.permute.xlu0 %558
        %560 = vrot.lane.b32.xlu0 %v553, 17
        %v561 = vpop.permute.xlu0 %560
        %562 = vrot.lane.b32.xlu0 %v554, 17
        %v563 = vpop.permute.xlu0 %562
        %v564 = vsel %vm287, %v559, %v561
        %v565 = vsel %vm287, %v561, %v563
        %v568 = vsel %vm307, %v564, 0.0
        %v569 = vsel %vm308, %v565, 0.0
        %570 = vst [vmem:[#allocation4] sm:$0xff] %v568
        %571 = vst [vmem:[#allocation4 + $0x8] sm:$0xff] %v569
        %v572 = vld [vmem:[#allocation3] sm:$0xff]
        %v573 = vld [vmem:[#allocation3 + $0x8] sm:$0xff]
        %v574 = vld [vmem:[#allocation3 + $0x10] sm:$0xff]
        %578 = vrot.lane.b32.xlu0 %v572, 16
        %v579 = vpop.permute.xlu0 %578
        %580 = vrot.lane.b32.xlu0 %v573, 16
        %v581 = vpop.permute.xlu0 %580
        %582 = vrot.lane.b32.xlu0 %v574, 16
        %v583 = vpop.permute.xlu0 %582
        %v584 = vsel %vm338, %v579, %v581
        %v585 = vsel %vm338, %v581, %v583
        %588 = vst [vmem:[#allocation4 + $0x10] sm:$0xff] %v584
        %589 = vst [vmem:[#allocation4 + $0x18] sm:$0xff] %v585
        %v590 = vld [vmem:[#allocation3] sm:$0xff]
        %v591 = vld [vmem:[#allocation3 + $0x8] sm:$0xff]
        %v592 = vld [vmem:[#allocation3 + $0x10] sm:$0xff]
        %596 = vrot.lane.b32.xlu0 %v590, 15
        %v597 = vpop.permute.xlu0 %596
        %598 = vrot.lane.b32.xlu0 %v591, 15
        %v599 = vpop.permute.xlu0 %598
        %600 = vrot.lane.b32.xlu0 %v592, 15
        %v601 = vpop.permute.xlu0 %600
        %v602 = vsel %vm361, %v597, %v599
        %v603 = vsel %vm361, %v599, %v601
        %v606 = vsel %vm350, %v602, 0.0
        %v607 = vsel %vm351, %v603, 0.0
        %608 = vst [vmem:[#allocation4 + $0x20] sm:$0xff] %v606
        %609 = vst [vmem:[#allocation4 + $0x28] sm:$0xff] %v607
        %v610 = vld [vmem:[#allocation3] sm:$0xff]
        %v611 = vld [vmem:[#allocation3 + $0x8] sm:$0xff]
        %v612 = vld [vmem:[#allocation3 + $0x10] sm:$0xff]
        %616 = vrot.lane.b32.xlu0 %v610, 1
        %v617 = vpop.permute.xlu0 %616
        %618 = vrot.lane.b32.xlu0 %v611, 1
        %v619 = vpop.permute.xlu0 %618
        %620 = vrot.lane.b32.xlu0 %v612, 1
        %v621 = vpop.permute.xlu0 %620
        %v622 = vsel %vm382, %v617, %v619
        %v623 = vsel %vm382, %v619, %v621
        %v626 = vsel %vm307, %v622, 0.0
        %v627 = vsel %vm308, %v623, 0.0
        %628 = vst [vmem:[#allocation4 + $0x30] sm:$0xff] %v626
        %629 = vst [vmem:[#allocation4 + $0x38] sm:$0xff] %v627
        %v630 = vld [vmem:[#allocation3 + $0x8] sm:$0xff]
        %v631 = vld [vmem:[#allocation3 + $0x10] sm:$0xff]
        %632 = vst [vmem:[#allocation4 + $0x40] sm:$0xff] %v630
        %633 = vst [vmem:[#allocation4 + $0x48] sm:$0xff] %v631
        %v634 = vld [vmem:[#allocation3 + $0x8] sm:$0xff]
        %v635 = vld [vmem:[#allocation3 + $0x10] sm:$0xff]
        %v636 = vld [vmem:[#allocation3 + $0x18] sm:$0xff]
        %640 = vrot.lane.b32.xlu0 %v634, 127
        %v641 = vpop.permute.xlu0 %640
        %642 = vrot.lane.b32.xlu0 %v635, 127
        %v643 = vpop.permute.xlu0 %642
        %644 = vrot.lane.b32.xlu0 %v636, 127
        %v645 = vpop.permute.xlu0 %644
        %v646 = vsel %vm407, %v641, %v643
        %v647 = vsel %vm407, %v643, %v645
        %v650 = vsel %vm350, %v646, 0.0
        %v651 = vsel %vm351, %v647, 0.0
        %652 = vst [vmem:[#allocation4 + $0x50] sm:$0xff] %v650
        %653 = vst [vmem:[#allocation4 + $0x58] sm:$0xff] %v651
        %v654 = vld [vmem:[#allocation3 + $0x8] sm:$0xff]
        %v655 = vld [vmem:[#allocation3 + $0x10] sm:$0xff]
        %v656 = vld [vmem:[#allocation3 + $0x18] sm:$0xff]
        %660 = vrot.lane.b32.xlu0 %v654, 113
        %v661 = vpop.permute.xlu0 %660
        %662 = vrot.lane.b32.xlu0 %v655, 113
        %v663 = vpop.permute.xlu0 %662
        %664 = vrot.lane.b32.xlu0 %v656, 113
        %v665 = vpop.permute.xlu0 %664
        %v666 = vsel %vm428, %v661, %v663
        %v667 = vsel %vm428, %v663, %v665
        %v670 = vsel %vm307, %v666, 0.0
        %v671 = vsel %vm308, %v667, 0.0
        %672 = vst [vmem:[#allocation4 + $0x60] sm:$0xff] %v670
        %673 = vst [vmem:[#allocation4 + $0x68] sm:$0xff] %v671
        %v674 = vld [vmem:[#allocation3 + $0x8] sm:$0xff]
        %v675 = vld [vmem:[#allocation3 + $0x10] sm:$0xff]
        %v676 = vld [vmem:[#allocation3 + $0x18] sm:$0xff]
        %680 = vrot.lane.b32.xlu0 %v674, 112
        %v681 = vpop.permute.xlu0 %680
        %682 = vrot.lane.b32.xlu0 %v675, 112
        %v683 = vpop.permute.xlu0 %682
        %684 = vrot.lane.b32.xlu0 %v676, 112
        %v685 = vpop.permute.xlu0 %684
        %v686 = vsel %vm449, %v681, %v683
        %v687 = vsel %vm449, %v683, %v685
        %690 = vst [vmem:[#allocation4 + $0x70] sm:$0xff] %v686
        %691 = vst [vmem:[#allocation4 + $0x78] sm:$0xff] %v687
        %v692 = vld [vmem:[#allocation3 + $0x8] sm:$0xff]
        %v693 = vld [vmem:[#allocation3 + $0x10] sm:$0xff]
        %v694 = vld [vmem:[#allocation3 + $0x18] sm:$0xff]
        %698 = vrot.lane.b32.xlu0 %v692, 111
        %v699 = vpop.permute.xlu0 %698
        %700 = vrot.lane.b32.xlu0 %v693, 111
        %v701 = vpop.permute.xlu0 %700
        %702 = vrot.lane.b32.xlu0 %v694, 111
        %v703 = vpop.permute.xlu0 %702
        %v704 = vsel %vm468, %v699, %v701
        %v705 = vsel %vm468, %v701, %v703
        %v708 = vsel %vm350, %v704, 0.0
        %v709 = vsel %vm351, %v705, 0.0
        %710 = vst [vmem:[#allocation4 + $0x80] sm:$0xff] %v708
        %711 = vst [vmem:[#allocation4 + $0x88] sm:$0xff] %v709
        %v712 = vld [vmem:[#allocation8] sm:$0xff]
        %v713 = vld [vmem:[#allocation4] sm:$0xff]
        %v714 = vld [vmem:[#allocation4 + $0x8] sm:$0xff]
        %v715 = vld [vmem:[#allocation4 + $0x10] sm:$0xff]
        %v716 = vld [vmem:[#allocation4 + $0x18] sm:$0xff]
        %v717 = vld [vmem:[#allocation4 + $0x20] sm:$0xff]
        %v718 = vld [vmem:[#allocation4 + $0x28] sm:$0xff]
        %v719 = vld [vmem:[#allocation4 + $0x30] sm:$0xff]
        %v720 = vld [vmem:[#allocation4 + $0x38] sm:$0xff]
        %v721 = vld [vmem:[#allocation4 + $0x40] sm:$0xff]
        %v722 = vld [vmem:[#allocation4 + $0x48] sm:$0xff]
        %v723 = vld [vmem:[#allocation4 + $0x50] sm:$0xff]
        %v724 = vld [vmem:[#allocation4 + $0x58] sm:$0xff]
        %v725 = vld [vmem:[#allocation4 + $0x60] sm:$0xff]
        %v726 = vld [vmem:[#allocation4 + $0x68] sm:$0xff]
        %v727 = vld [vmem:[#allocation4 + $0x70] sm:$0xff]
        %v728 = vld [vmem:[#allocation4 + $0x78] sm:$0xff]
        %v729 = vld [vmem:[#allocation4 + $0x80] sm:$0xff]
        %v730 = vld [vmem:[#allocation4 + $0x88] sm:$0xff]
        %v731 = vld [vmem:[%s4] sm:$0xff]
        %733 = vset.pattern.permute.xlu0 0
        %734 = vperm.xlu0 %733, %v731
        %v735 = vpop.permute.xlu0 %734
        %v738 = vsel %vm502, %v712, 0
        %740 = vmatpush.msra.mxu0 0.0
        %741 = vmatpush.msra.mxu0 0.0
        %742 = vmatpush.msra.mxu0 0.0
        %743 = vmatpush.msra.mxu0 0.0
        %744 = vmatpush.msra.mxu0 0.0
        %745 = vmatpush.msra.mxu0 0.0
        %746 = vmatpush.msra.mxu0 0.0
        %747 = vmatpush.msra.mxu0 %v729
        %748 = vmatpush.msra.mxu0 %v727
        %749 = vmatpush.msra.mxu0 %v725
        %750 = vmatpush.msra.mxu0 %v723
        %751 = vmatpush.msra.mxu0 %v721
        %752 = vmatpush.msra.mxu0 %v719
        %753 = vmatpush.msra.mxu0 %v717
        %754 = vmatpush.msra.mxu0 %v715
        %755 = vmatpush.msra.mxu0 %v713
        %756 = vmatmul.f32.gmra.mxu0 %v738
        %v757 = vpop.f32.mrf.mxu0
        %v758 = vadd.f32 %v735, %v757
        %759 = vdwg.mxu0
        %760 = vmatpush.msra.mxu0 0.0
        %761 = vmatpush.msra.mxu0 0.0
        %762 = vmatpush.msra.mxu0 0.0
        %763 = vmatpush.msra.mxu0 0.0
        %764 = vmatpush.msra.mxu0 0.0
        %765 = vmatpush.msra.mxu0 0.0
        %766 = vmatpush.msra.mxu0 0.0
        %767 = vmatpush.msra.mxu0 %v730
        %768 = vmatpush.msra.mxu0 %v728
        %769 = vmatpush.msra.mxu0 %v726
        %770 = vmatpush.msra.mxu0 %v724
        %771 = vmatpush.msra.mxu0 %v722
        %772 = vmatpush.msra.mxu0 %v720
        %773 = vmatpush.msra.mxu0 %v718
        %774 = vmatpush.msra.mxu0 %v716
        %775 = vmatpush.msra.mxu0 %v714
        %776 = vmatmul.f32.gmra.mxu0 %v738
        %v777 = vpop.f32.mrf.mxu0
        %v778 = vadd.f32 %v735, %v777
        %779 = vdwg.mxu0
        %v780 = vadd.f32 %v758, %v550
        %v781 = vadd.f32 %v778, %v551
        %v782 = vmax.f32 %v780, 0.0
        %v783 = vmax.f32 %v781, 0.0
        %v786 = vrot.slane %v783, 4
        %vm787 = vcmask 1043456
        %v788 = vsel %vm787, %v782, %v786
        %790 = vst [vmem:[%s247] sm:$0xff] %v788
        %s791 = sand.u32 %s139, 1
        %s792 = scalar_lea.sflag [#allocation7], %s791
        %s793 = sand.u32 %s139, 1
        %s794 = smul.addr %s793, 8
        %s795 = scalar_lea.vmem [#allocation10], %s794
        // Predicated region
        $region49: #{tpu_custom_call.1} parent=39 // pred_check
          %p796 = pneg %p149
        $region50: #{tpu_custom_call.1} parent=39 // pred_check_branch
          %798 = sbr.rel (%p796) target = $region52
        $region51: #{tpu_custom_call.1} parent=39 // pred_region
          %800 = vsyncadd %s792, 0
          %s801 = smul.addr %s21, 2
          %s802 = smul.addr %s801, 4
          %s803 = scalar_lea.hbm %s5, %s802
          %s805 = sshll.u32 %s795, 4
          %s806 = int_to_ptr.vmem [resolvable:$true] %s805
          %s807 = sshll.u32 %s803, 4
          %s808 = int_to_ptr.hbm [resolvable:$true] %s807
          %810 = dma.vmem_to_hbm [thread:$0]  %s806, 128, %s808, %s792
        $region52: #{tpu_custom_call.1} parent=39 // pred_fallthru
          _
      $region40: #{tpu_custom_call.1} parent=5 // pred_fallthru
        _
      %p811 = scmp.le.s32.totalorder 2, %s16
      // Predicated region
      $region53: #{tpu_custom_call.1} parent=5 // pred_check
        %p812 = pneg %p811
      $region54: #{tpu_custom_call.1} parent=5 // pred_check_branch
        %814 = sbr.rel (%p812) target = $region56
      $region55: #{tpu_custom_call.1} parent=5 // pred_region
        %s815 = ssub.s32 %s16, 2
        // Predicated region
        $region57: #{tpu_custom_call.1} parent=55 // pred_check
          %p816 = pneg %p155
        $region58: #{tpu_custom_call.1} parent=55 // pred_check_branch
          %818 = sbr.rel (%p816) target = $region60
        $region59: #{tpu_custom_call.1} parent=55 // pred_region
          %s819 = sand.u32 %s140, 1
          %s820 = scalar_lea.sflag [#allocation7], %s819
          %s821 = sand.u32 %s140, 1
          %s822 = smul.addr %s821, 8
          %s823 = scalar_lea.vmem [#allocation10], %s822
          %825 = dma.done %s820, 128
        $region60: #{tpu_custom_call.1} parent=55 // pred_fallthru
          _
      $region56: #{tpu_custom_call.1} parent=5 // pred_fallthru
        _
    $region6: #{tpu_custom_call.1} parent=1 // loop_footer
      %s20 = sadd.s32 1, %s16
    $region7: #{tpu_custom_call.1} parent=1 // loop_footer_branch
      %15 = sbr.rel target = $region3
    $region8: #{tpu_custom_call.1} parent=1 // loop_exit
      _
    %826 = vsyncpa [#allocation6], 1
    %s827 = scalar_lea.sflag [#allocation6], 1
    %828 = vsyncpa %s827, 1
    %829 = vsyncpa [#allocation9], 1
    %830 = vsyncpa [#allocation7], 1
    %s831 = scalar_lea.sflag [#allocation7], 1
    %832 = vsyncpa %s831, 1

</llo_original>
